<compile_context>
chip_gen: v5e
topology: v5e:2x2
jax: 0.10.0
libtpu: 0.0.40
codegen_flags: <defaults>
</compile_context>

<pallas_src>
import functools

import jax
import jax.numpy as jnp
from jax.experimental import pallas as pl
from jax.experimental.pallas import tpu as pltpu

IN_FEATURES = 64
OUT_FEATURES = 10
OUT_PAD = 128            # lane-padded weight/bias width (multiple of 128)
DEFAULT_TILE_B = 4096    # batch row tile for the tiled path (multiple of 8)
SINGLE_BLOCK_MAX_B = 256 # grid-less all-VMEM path only for tiny batches


def _round_up(n, m):
    return ((n + m - 1) // m) * m


def linear_kernel(x_ref, w_ref, b_ref, o_ref):
    # (TB, 64) @ (64, 128) on the MXU with f32 accumulation; bias add on VPU.
    # Only the first OUT_FEATURES lanes are stored -> (TB, 10) output block,
    # no padded HBM writeback and no wrapper-side slice.
    acc = jnp.dot(x_ref[...], w_ref[...], preferred_element_type=jnp.float32)
    o_ref[...] = (acc + b_ref[...])[:, :OUT_FEATURES].astype(o_ref.dtype)


def prepare_params(weight, bias):
    """One-time parameter prep (NOT in the per-call forward path).

    weight: (10, 64) f32 in PyTorch nn.Linear layout; bias: (10,) f32.
    Returns (w_pad, b_pad): (64, 128) and (1, 128), zero-padded on the lane
    axis so the in-kernel matmul stays lane-aligned.
    """
    w_t = weight.T.astype(jnp.float32)                               # (64, 10)
    w_pad = jnp.zeros((IN_FEATURES, OUT_PAD), jnp.float32)
    w_pad = w_pad.at[:, :OUT_FEATURES].set(w_t)
    b_pad = jnp.zeros((1, OUT_PAD), jnp.float32)
    b_pad = b_pad.at[0, :OUT_FEATURES].set(bias.astype(jnp.float32))
    return w_pad, b_pad


def _cost_estimate(batch):
    return pl.CostEstimate(
        flops=2 * batch * IN_FEATURES * OUT_PAD,
        transcendentals=0,
        bytes_accessed=4 * (batch * IN_FEATURES          # x read
                            + IN_FEATURES * OUT_PAD      # weight read
                            + OUT_PAD                    # bias read
                            + batch * OUT_FEATURES),     # unpadded output write
    )


def _forward_single_block(x, w_pad, b_pad):
    """Tiny B: one block, everything in VMEM, no grid / no pipelining."""
    B = x.shape[0]
    vmem = pltpu.MemorySpace.VMEM
    return pl.pallas_call(
        linear_kernel,
        out_shape=jax.ShapeDtypeStruct((B, OUT_FEATURES), jnp.float32),
        in_specs=[pl.BlockSpec(memory_space=vmem)] * 3,
        out_specs=pl.BlockSpec(memory_space=vmem),
        cost_estimate=_cost_estimate(B),
    )(x, w_pad, b_pad)


def _forward_tiled(x, w_pad, b_pad, tile_b):
    """Batch-tiled grid; partial last block is masked by Pallas (no pre-pad)."""
    B = x.shape[0]
    return pl.pallas_call(
        linear_kernel,
        out_shape=jax.ShapeDtypeStruct((B, OUT_FEATURES), jnp.float32),
        grid=(pl.cdiv(B, tile_b),),
        in_specs=[
            pl.BlockSpec((tile_b, IN_FEATURES), lambda i: (i, 0)),
            pl.BlockSpec((IN_FEATURES, OUT_PAD), lambda i: (0, 0)),
            pl.BlockSpec((1, OUT_PAD), lambda i: (0, 0)),
        ],
        out_specs=pl.BlockSpec((tile_b, OUT_FEATURES), lambda i: (i, 0)),
        compiler_params=pltpu.CompilerParams(
            dimension_semantics=("parallel",)),   # 2-TC sharding on v7x
        cost_estimate=_cost_estimate(B),
    )(x, w_pad, b_pad)


@functools.partial(jax.jit, static_argnames=("tile_b",))
def toy_model_forward(x, w_pad, b_pad, *, tile_b=DEFAULT_TILE_B):
    """x: (B, 64) f32. Returns (B, 10) f32 == x @ W.T + b (PyTorch semantics)."""
    B = x.shape[0]
    x = x.astype(jnp.float32)
    if B <= SINGLE_BLOCK_MAX_B:
        # Tiny batch: pure launch overhead territory -- no grid, no pipeline.
        return _forward_single_block(x, w_pad, b_pad)
    # Tiled path: cap the tile at round_up(B/2, 8) so the parallel batch axis
    # always has >= 2 balanced grid steps (keeps both v7x TensorCores busy) and
    # the double-buffered blocks stay far inside every chip's scoped VMEM.
    tb = max(8, _round_up(min(tile_b, pl.cdiv(B, 2)), 8))
    return _forward_tiled(x, w_pad, b_pad, tb)


if __name__ == "__main__":
    key = jax.random.PRNGKey(0)
    kw, kb, kx1, kx2, kx3 = jax.random.split(key, 5)

    # PyTorch-layout parameters, mimicking nn.Linear's uniform(-1/sqrt(fan_in)) init.
    bound = 1.0 / (IN_FEATURES ** 0.5)
    weight = jax.random.uniform(kw, (OUT_FEATURES, IN_FEATURES),
                                dtype=jnp.float32, minval=-bound, maxval=bound)
    bias = jax.random.uniform(kb, (OUT_FEATURES,),
                              dtype=jnp.float32, minval=-bound, maxval=bound)

    # One-time parameter prep: transpose + lane-pad (no per-call transpose).
    w_pad, b_pad = prepare_params(weight, bias)

    def reference(x):
        return jnp.dot(x, weight.T, precision=jax.lax.Precision.HIGHEST) + bias

    # 1) Tiny batch -> grid-less single-block path.
    x1 = jax.random.normal(kx1, (8, IN_FEATURES), dtype=jnp.float32)
    out1 = jax.block_until_ready(toy_model_forward(x1, w_pad, b_pad))
    assert out1.shape == (8, OUT_FEATURES)
    assert jnp.allclose(out1, reference(x1), atol=1e-4, rtol=1e-4)

    # 2) Non-multiple batch -> tiled path, 2 balanced steps, masked tail block.
    x2 = jax.random.normal(kx2, (300, IN_FEATURES), dtype=jnp.float32)
    out2 = jax.block_until_ready(toy_model_forward(x2, w_pad, b_pad))
    assert out2.shape == (300, OUT_FEATURES)
    assert jnp.allclose(out2, reference(x2), atol=1e-4, rtol=1e-4)

    # 3) Evenly divisible batch with an explicit smaller tile (4 grid steps).
    x3 = jax.random.normal(kx3, (1024, IN_FEATURES), dtype=jnp.float32)
    out3 = jax.block_until_ready(toy_model_forward(x3, w_pad, b_pad, tile_b=256))
    assert out3.shape == (1024, OUT_FEATURES)
    assert jnp.allclose(out3, reference(x3), atol=1e-4, rtol=1e-4)

    print("KERNEL_OK")
</pallas_src>

<mosaic_0001>
module attributes {stable_mosaic.version = 11 : i64} {
  func.func @linear_kernel(%arg0: memref<8x64xf32, #tpu.memory_space<vmem>>, %arg1: memref<64x128xf32, #tpu.memory_space<vmem>>, %arg2: memref<1x128xf32, #tpu.memory_space<vmem>>, %arg3: memref<8x10xf32, #tpu.memory_space<vmem>>) attributes {dimension_semantics = [], scalar_prefetch = 0 : i64, scratch_operands = 0 : i64, tpu.core_type = #tpu.core_type<tc>} {
    %c0 = arith.constant 0 : index
    %c0_0 = arith.constant 0 : index
    %0 = vector.load %arg0[%c0, %c0_0] : memref<8x64xf32, #tpu.memory_space<vmem>>, vector<8x64xf32>
    %c0_1 = arith.constant 0 : index
    %c0_2 = arith.constant 0 : index
    %1 = vector.load %arg1[%c0_1, %c0_2] : memref<64x128xf32, #tpu.memory_space<vmem>>, vector<64x128xf32>
    %cst = arith.constant dense<0.000000e+00> : vector<8x128xf32>
    %2 = tpu.matmul %0, %1, %cst {dimension_numbers = #tpu.dot_dimension_numbers<[1], [0], [0], [1], [0, 0, 1, 1], [], []>} : vector<8x64xf32>, vector<64x128xf32>, vector<8x128xf32> -> vector<8x128xf32>
    %c0_3 = arith.constant 0 : index
    %c0_4 = arith.constant 0 : index
    %3 = vector.load %arg2[%c0_3, %c0_4] : memref<1x128xf32, #tpu.memory_space<vmem>>, vector<1x128xf32>
    %4 = vector.broadcast %3 : vector<1x128xf32> to vector<8x128xf32>
    %5 = arith.addf %2, %4 : vector<8x128xf32>
    %6 = vector.extract_strided_slice %5 {offsets = [0, 0], sizes = [8, 10], strides = [1, 1]} : vector<8x128xf32> to vector<8x10xf32>
    %c0_5 = arith.constant 0 : index
    %c0_6 = arith.constant 0 : index
    %7 = vector.load %arg3[%c0_5, %c0_6] : memref<8x10xf32, #tpu.memory_space<vmem>>, vector<8x10xf32>
    tpu.vector_store %arg3[%c0_5, %c0_6], %6 {strides = array<i32>} : memref<8x10xf32, #tpu.memory_space<vmem>>, vector<8x10xf32>,
    return
  }
}

</mosaic_0001>

<llo_original>
// kernel: toy_model_forward.1
$region0: #{toy_model_forward.1}
  #allocation0 [shape = 'u32[]', space=smem, size = 0x4, offset = 0x4, fixed_abs, tag = 'smem constant byte address 0x4 - core index']
  #allocation1 [shape = 'u32[72,128]{1,0:T(1,128)}', space=vmem, size = 0x9000, scoped, tag = 'internal scratch']
  %s0 = inlined_call_operand.hbm [shape: f32[8,64], index: 0, kind: input, shape index: {}]
  %s1 = inlined_call_operand.hbm [shape: f32[64,128], index: 1, kind: input, shape index: {}]
  %s2 = inlined_call_operand.vmem [shape: f32[1,128], index: 2, kind: input, shape index: {}]
  %s3 = inlined_call_operand.hbm [shape: f32[8,10], index: 3, kind: output, shape index: {}]
  %s4 = sld [smem:[#allocation0]]
  $region30: #{toy_model_forward.1} parent=0
    _
  %s6 = ssub.s32 1, %s4
  %s7 = scalar_select 0, %s6, %s4
  $region1: #{toy_model_forward.1} parent=0
    #allocation2 [shape = 'u8[4096]{0}', space=vmem, size = 0x1000, scoped, tag = 'input window, operand 0, single buffered']
    #allocation3 [shape = 's32[1]{0}', space=sflag, size = 0x4, scoped, tag = 'scoped memory for toy_model_forward.1']
    #allocation4 [shape = 's32[1]{0}', space=sflag, size = 0x4, scoped, tag = 'scoped memory for toy_model_forward.1']
    #allocation5 [shape = 'u8[32768]{0}', space=vmem, size = 0x8000, scoped, tag = 'input window, operand 1, single buffered']
    #allocation6 [shape = 's32[1]{0}', space=sflag, size = 0x4, scoped, tag = 'scoped memory for toy_model_forward.1']
    #allocation7 [shape = 'u8[4096]{0}', space=vmem, size = 0x1000, scoped, tag = 'output window, operand 0, single buffered']
    %8 = vsyncpa [#allocation3], 0
    %9 = vsyncpa [#allocation6], 0
    %10 = vsyncpa [#allocation4], 0
    // Predicated region
    $region2: #{toy_model_forward.1} parent=1 // pred_check
      _
    $region3: #{toy_model_forward.1} parent=1 // pred_check_branch
      %12 = sbr.rel (0) target = $region5
    $region4: #{toy_model_forward.1} parent=1 // pred_region
      %14 = vsyncadd [#allocation3], 0
      %s16 = sshll.u32 %s0, 4
      %s17 = int_to_ptr.hbm [resolvable:$true] %s16
      %s18 = sshll.u32 [#allocation2], 4
      %s19 = int_to_ptr.vmem [resolvable:$true] %s18
      %21 = dma.hbm_to_vmem [thread:$0]  %s17, 128, %s19, [#allocation3]
    $region5: #{toy_model_forward.1} parent=1 // pred_fallthru
      _
    // Predicated region
    $region6: #{toy_model_forward.1} parent=1 // pred_check
      _
    $region7: #{toy_model_forward.1} parent=1 // pred_check_branch
      %23 = sbr.rel (0) target = $region9
    $region8: #{toy_model_forward.1} parent=1 // pred_region
      %25 = vsyncadd [#allocation6], 0
      %s26 = sshll.u32 %s1, 4
      %s27 = int_to_ptr.hbm [resolvable:$true] %s26
      %s28 = sshll.u32 [#allocation5], 4
      %s29 = int_to_ptr.vmem [resolvable:$true] %s28
      %34 = dma.hbm_to_vmem [thread:$0]  %s27, 1024, %s29, [#allocation6], 128, 128, 8
    $region9: #{toy_model_forward.1} parent=1 // pred_fallthru
      _
    // Predicated region
    $region10: #{toy_model_forward.1} parent=1 // pred_check
      _
    $region11: #{toy_model_forward.1} parent=1 // pred_check_branch
      %36 = sbr.rel (0) target = $region13
    $region12: #{toy_model_forward.1} parent=1 // pred_region
      _
    $region13: #{toy_model_forward.1} parent=1 // pred_fallthru
      _
    // Predicated region
    $region14: #{toy_model_forward.1} parent=1 // pred_check
      _
    $region15: #{toy_model_forward.1} parent=1 // pred_check_branch
      %38 = sbr.rel (0) target = $region17
    $region16: #{toy_model_forward.1} parent=1 // pred_region
      %40 = dma.done [#allocation3], 128
    $region17: #{toy_model_forward.1} parent=1 // pred_fallthru
      _
    // Predicated region
    $region18: #{toy_model_forward.1} parent=1 // pred_check
      _
    $region19: #{toy_model_forward.1} parent=1 // pred_check_branch
      %42 = sbr.rel (0) target = $region21
    $region20: #{toy_model_forward.1} parent=1 // pred_region
      %44 = dma.done [#allocation6], 1024
    $region21: #{toy_model_forward.1} parent=1 // pred_fallthru
      _
    %v45 = vld [vmem:[#allocation2] sm:$0xff]
    %v46 = vld [vmem:[#allocation5] sm:$0xff]
    %v47 = vld [vmem:[#allocation5 + $0x8] sm:$0xff]
    %v48 = vld [vmem:[#allocation5 + $0x10] sm:$0xff]
    %v49 = vld [vmem:[#allocation5 + $0x18] sm:$0xff]
    %v50 = vld [vmem:[#allocation5 + $0x20] sm:$0xff]
    %v51 = vld [vmem:[#allocation5 + $0x28] sm:$0xff]
    %v52 = vld [vmem:[#allocation5 + $0x30] sm:$0xff]
    %v53 = vld [vmem:[#allocation5 + $0x38] sm:$0xff]
    %v54 = vld [vmem:[%s2] sm:$0x1]
    %v56 = vperm.slane %v54, 0
    %vm58 = vcmask 523264
    %v60 = vsel %vm58, %v45, 0
    %62 = vmatpush.msra.mxu0 0.0
    %63 = vmatpush.msra.mxu0 0.0
    %64 = vmatpush.msra.mxu0 0.0
    %65 = vmatpush.msra.mxu0 0.0
    %66 = vmatpush.msra.mxu0 0.0
    %67 = vmatpush.msra.mxu0 0.0
    %68 = vmatpush.msra.mxu0 0.0
    %69 = vmatpush.msra.mxu0 0.0
    %70 = vmatpush.msra.mxu0 %v53
    %71 = vmatpush.msra.mxu0 %v52
    %72 = vmatpush.msra.mxu0 %v51
    %73 = vmatpush.msra.mxu0 %v50
    %74 = vmatpush.msra.mxu0 %v49
    %75 = vmatpush.msra.mxu0 %v48
    %76 = vmatpush.msra.mxu0 %v47
    %77 = vmatpush.msra.mxu0 %v46
    %78 = vmatmul.f32.gmra.mxu0 %v60
    %v79 = vpop.f32.mrf.mxu0
    %v80 = vadd.f32 %v56, %v79
    %81 = vdwg.mxu0
    %vm82 = vcmask 80896
    %83 = vst.msk [vmem:[#allocation7] sm:$0xff] %vm82, %v80
    // Predicated region
    $region22: #{toy_model_forward.1} parent=1 // pred_check
      _
    $region23: #{toy_model_forward.1} parent=1 // pred_check_branch
      %85 = sbr.rel (0) target = $region25
    $region24: #{toy_model_forward.1} parent=1 // pred_region
      %87 = vsyncadd [#allocation4], 0
      %s89 = sshll.u32 [#allocation7], 4
      %s90 = int_to_ptr.vmem [resolvable:$true] %s89
      %s91 = sshll.u32 %s3, 4
      %s92 = int_to_ptr.hbm [resolvable:$true] %s91
      %94 = dma.vmem_to_hbm [thread:$0]  %s90, 128, %s92, [#allocation4]
    $region25: #{toy_model_forward.1} parent=1 // pred_fallthru
      _
    // Predicated region
    $region26: #{toy_model_forward.1} parent=1 // pred_check
      _
    $region27: #{toy_model_forward.1} parent=1 // pred_check_branch
      %96 = sbr.rel (0) target = $region29
    $region28: #{toy_model_forward.1} parent=1 // pred_region
      %98 = dma.done [#allocation4], 128
    $region29: #{toy_model_forward.1} parent=1 // pred_fallthru
      _
    %99 = vsyncpa [#allocation3], 1
    %100 = vsyncpa [#allocation6], 1
    %101 = vsyncpa [#allocation4], 1

</llo_original>
